<compile_context>
chip_gen: v7x
topology: tpu7x:2x2x1
jax: 0.10.0
libtpu: 0.0.40
codegen_flags: <defaults>
</compile_context>

<pallas_src>
import jax
import jax.numpy as jnp
from jax.experimental import pallas as pl
from jax.experimental.pallas import tpu as pltpu


def linear_model_kernel(x_ref, w_ref, b_ref, o_ref):
    # Everything (normalization, theta + epsilon, de-normalization) is folded
    # into (W_fused, b_fused) in the wrapper; the hot path is one MXU matmul
    # plus a broadcast bias add.
    o_ref[...] = (
        jnp.dot(x_ref[...], w_ref[...], preferred_element_type=jnp.float32)
        + b_ref[...]
    )


def linear_model_forward(x, L, S_col, epsilon_col,
                         in_shift, in_scale, out_scale, out_shift,
                         obs_dim, act_dim, *, block_n=1024):
    """Parameter algebra in plain JAX (tiny, once per call); batch affine map in Pallas."""
    N = x.shape[0]

    # theta = L @ S[task_id]; fuse the epsilon term:  x@theta.T + x@eps.T == x@(theta+eps).T
    theta = jnp.dot(L, S_col)                                     # [act*(obs+1), 1]
    comb = (theta + epsilon_col).reshape(act_dim, obs_dim + 1)    # [act, obs+1]
    W = comb[:, :obs_dim].T                                       # [obs, act]
    b = comb[:, obs_dim]                                          # [act]  (cat'd-ones column)

    # Fold input normalization and output affine into W/b:
    #   ((x - in_shift) * inv_scale) @ W * out_scale + out_shift == x @ W_fused + b_fused
    inv_scale = 1.0 / (in_scale + 1e-8)                           # [obs]
    W_fused = (inv_scale[:, None] * W) * out_scale[None, :]       # [obs, act]
    b_fused = (b - (in_shift * inv_scale) @ W) * out_scale + out_shift  # [act]
    b_fused = b_fused[None, :]                                    # [1, act]

    # Batch tile: N <= block_n -> single full-dim block; otherwise a
    # divisible-by-8 tile so the (8,128) block constraint holds and the last
    # (possibly partial) block is masked by Pallas.
    bn = min(N, block_n)
    grid = (pl.cdiv(N, bn),)

    cost = pl.CostEstimate(
        flops=2 * N * obs_dim * act_dim,
        transcendentals=0,
        bytes_accessed=4 * (N * obs_dim + obs_dim * act_dim + act_dim + N * act_dim),
    )

    return pl.pallas_call(
        linear_model_kernel,
        out_shape=jax.ShapeDtypeStruct((N, act_dim), jnp.float32),
        grid=grid,
        in_specs=[
            pl.BlockSpec((bn, obs_dim), lambda i: (i, 0)),        # x: tiled over batch
            pl.BlockSpec((obs_dim, act_dim), lambda i: (0, 0)),   # fused weight (resident)
            pl.BlockSpec((1, act_dim), lambda i: (0, 0)),         # fused bias   (resident)
        ],
        out_specs=pl.BlockSpec((bn, act_dim), lambda i: (i, 0)),
        compiler_params=pltpu.CompilerParams(
            dimension_semantics=("parallel",),                    # v7x: shard batch tiles across TCs
        ),
        cost_estimate=cost,
    )(x, W_fused, b_fused)


if __name__ == "__main__":
    obs_dim = 16
    act_dim = 4
    dict_dim = 8
    N = 8

    key = jax.random.PRNGKey(0)
    k_x, k_L, k_shift, k_scale, k_oshift, k_oscale = jax.random.split(key, 6)

    # Module parameters (mirroring __init__ / set_task(task_id=0)):
    #   L = (rand - 0.5) * 2 * sqrt(1/obs_dim) * 0.01
    L = (jax.random.uniform(k_L, (act_dim * (obs_dim + 1), dict_dim), jnp.float32) - 0.5) \
        * 2.0 * jnp.sqrt(1.0 / obs_dim) * 0.01
    #   S[task_0] = one-hot column at index T=0
    S_col = jnp.zeros((dict_dim, 1), jnp.float32).at[0, 0].set(1.0)
    #   epsilon_col = zeros (first task, T < dict_dim)
    epsilon_col = jnp.zeros((act_dim * (obs_dim + 1), 1), jnp.float32)

    # Transformations (non-trivial values to exercise the affine folding)
    in_shift = jax.random.normal(k_shift, (obs_dim,), jnp.float32) * 0.1
    in_scale = jax.random.uniform(k_scale, (obs_dim,), jnp.float32, minval=0.5, maxval=1.5)
    out_shift = jax.random.normal(k_oshift, (act_dim,), jnp.float32) * 0.1
    out_scale = jax.random.uniform(k_oscale, (act_dim,), jnp.float32, minval=0.5, maxval=1.5)

    x = jax.random.normal(k_x, (N, obs_dim), jnp.float32)

    out = linear_model_forward(x, L, S_col, epsilon_col,
                               in_shift, in_scale, out_scale, out_shift,
                               obs_dim, act_dim)
    out = jax.block_until_ready(out)

    # Pure-JAX reference, following the PyTorch code literally.
    ref = (x - in_shift) / (in_scale + 1e-8)
    ref = jnp.concatenate([ref, jnp.ones((N, 1), jnp.float32)], axis=1)
    theta_mat = jnp.dot(L, S_col).reshape(act_dim, obs_dim + 1)
    eps_mat = epsilon_col.reshape(act_dim, obs_dim + 1)
    ref = jnp.dot(ref, theta_mat.T) + jnp.dot(ref, eps_mat.T)
    ref = ref * out_scale + out_shift

    assert out.shape == (N, act_dim)
    assert jnp.allclose(out, ref, atol=1e-5, rtol=1e-5), (out, ref)
    print("KERNEL_OK")
</pallas_src>

<mosaic_0001>
module attributes {stable_mosaic.version = 11 : i64} {
  func.func @linear_model_kernel(%arg0: i32, %arg1: memref<8x16xf32, #tpu.memory_space<vmem>>, %arg2: memref<16x4xf32, #tpu.memory_space<vmem>>, %arg3: memref<1x4xf32, #tpu.memory_space<vmem>>, %arg4: memref<8x4xf32, #tpu.memory_space<vmem>>) attributes {dimension_semantics = [#tpu.dimension_semantics<parallel>], iteration_bounds = array<i64: 1>, scalar_prefetch = 0 : i64, scratch_operands = 0 : i64, tpu.core_type = #tpu.core_type<tc>, window_params = [{transform_indices = @transform_0, window_bounds = array<i64: 8, 16>}, {pipeline_mode = #tpu.pipeline_mode<synchronous>, transform_indices = @transform_1, window_bounds = array<i64: 16, 4>}, {pipeline_mode = #tpu.pipeline_mode<synchronous>, transform_indices = @transform_2, window_bounds = array<i64: 1, 4>}, {transform_indices = @transform_3, window_bounds = array<i64: 8, 4>}]} {
    %c0 = arith.constant 0 : index
    %c0_0 = arith.constant 0 : index
    %0 = vector.load %arg1[%c0, %c0_0] : memref<8x16xf32, #tpu.memory_space<vmem>>, vector<8x16xf32>
    %c0_1 = arith.constant 0 : index
    %c0_2 = arith.constant 0 : index
    %1 = vector.load %arg2[%c0_1, %c0_2] : memref<16x4xf32, #tpu.memory_space<vmem>>, vector<16x4xf32>
    %cst = arith.constant dense<0.000000e+00> : vector<8x4xf32>
    %2 = tpu.matmul %0, %1, %cst {dimension_numbers = #tpu.dot_dimension_numbers<[1], [0], [0], [1], [0, 0, 1, 1], [], []>} : vector<8x16xf32>, vector<16x4xf32>, vector<8x4xf32> -> vector<8x4xf32>
    %c0_3 = arith.constant 0 : index
    %c0_4 = arith.constant 0 : index
    %3 = vector.load %arg3[%c0_3, %c0_4] : memref<1x4xf32, #tpu.memory_space<vmem>>, vector<1x4xf32>
    %4 = vector.broadcast %3 : vector<1x4xf32> to vector<8x4xf32>
    %5 = arith.addf %2, %4 : vector<8x4xf32>
    %c0_5 = arith.constant 0 : index
    %c0_6 = arith.constant 0 : index
    %6 = vector.load %arg4[%c0_5, %c0_6] : memref<8x4xf32, #tpu.memory_space<vmem>>, vector<8x4xf32>
    tpu.vector_store %arg4[%c0_5, %c0_6], %5 {strides = array<i32>} : memref<8x4xf32, #tpu.memory_space<vmem>>, vector<8x4xf32>,
    return
  }
  func.func @transform_0(%arg0: i32) -> (i32, i32) {
    %c0_i32 = arith.constant 0 : i32
    %c0_i32_0 = arith.constant 0 : i32
    return %arg0, %c0_i32 : i32, i32
  }
  func.func @transform_1(%arg0: i32) -> (i32, i32) {
    %c0_i32 = arith.constant 0 : i32
    %c0_i32_0 = arith.constant 0 : i32
    %c0_i32_1 = arith.constant 0 : i32
    return %c0_i32, %c0_i32_0 : i32, i32
  }
  func.func @transform_2(%arg0: i32) -> (i32, i32) {
    %c0_i32 = arith.constant 0 : i32
    %c0_i32_0 = arith.constant 0 : i32
    %c0_i32_1 = arith.constant 0 : i32
    return %c0_i32, %c0_i32_0 : i32, i32
  }
  func.func @transform_3(%arg0: i32) -> (i32, i32) {
    %c0_i32 = arith.constant 0 : i32
    %c0_i32_0 = arith.constant 0 : i32
    return %arg0, %c0_i32 : i32, i32
  }
}

</mosaic_0001>

<llo_original>
// kernel: tpu_custom_call.1
$region0: #{tpu_custom_call.1}
  #allocation0 [shape = 'u32[]', space=smem, size = 0x4, offset = 0x4, fixed_abs, tag = 'smem constant byte address 0x4 - core index']
  #allocation1 [shape = 'u32[144,128]{1,0:T(1,128)}', space=vmem, size = 0x12000, scoped, tag = 'internal scratch']
  %s0 = inlined_call_operand.vmem [shape: f32[8,16], index: 0, kind: input, shape index: {}]
  %s1 = inlined_call_operand.vmem [shape: f32[16,4], index: 1, kind: input, shape index: {}]
  %s2 = inlined_call_operand.vmem [shape: f32[1,4], index: 2, kind: input, shape index: {}]
  %s3 = inlined_call_operand.vmem [shape: f32[8,4], index: 3, kind: output, shape index: {}]
  %s4 = sld [smem:[#allocation0]]
  $region22: #{tpu_custom_call.1} parent=0
    _
  %s6 = ssub.s32 1, %s4
  %s7 = scalar_select 0, %s6, %s4
  // Predicated region
  $region2: #{tpu_custom_call.1} parent=0 // pred_check
    _
  $region3: #{tpu_custom_call.1} parent=0 // pred_check_branch
    %9 = sbr.rel (0) target = $region5
  $region4: #{tpu_custom_call.1} parent=0 // pred_region
    _
  $region5: #{tpu_custom_call.1} parent=0 // pred_fallthru
    _
  // Predicated region
  $region6: #{tpu_custom_call.1} parent=0 // pred_check
    _
  $region7: #{tpu_custom_call.1} parent=0 // pred_check_branch
    %11 = sbr.rel (0) target = $region9
  $region8: #{tpu_custom_call.1} parent=0 // pred_region
    _
  $region9: #{tpu_custom_call.1} parent=0 // pred_fallthru
    _
  // Predicated region
  $region10: #{tpu_custom_call.1} parent=0 // pred_check
    _
  $region11: #{tpu_custom_call.1} parent=0 // pred_check_branch
    %13 = sbr.rel (0) target = $region13
  $region12: #{tpu_custom_call.1} parent=0 // pred_region
    _
  $region13: #{tpu_custom_call.1} parent=0 // pred_fallthru
    _
  %v14 = vld [vmem:[%s0] sm:$0xff]
  %v15 = vld [vmem:[%s1] sm:$0xff]
  %v16 = vld [vmem:[%s1 + $0x8] sm:$0xff]
  %v17 = vld [vmem:[%s2] sm:$0x1]
  %v19 = vlaneseq
  %v20 = vshrl.u32 %v19, 7
  %v21 = vsub.s32 0, %v20
  %v22 = vrot.slane %v17, %v21
  %vm24 = vcmask 130048
  %v26 = vsel %vm24, %v14, 0
  %28 = vmatprep.subr.mxu0 0.0
  %29 = vmatpush1.msra.mxu0 %v15
  %30 = vmatprep.subr.mxu0 0.0
  %31 = vmatpush1.msra.mxu0 %v16
  %32 = vmatprep.subr.mxu0 0.0
  %33 = vmatpush1.msra.mxu0 0.0
  %34 = vmatprep.subr.mxu0 0.0
  %35 = vmatpush1.msra.mxu0 0.0
  %36 = vmatprep.subr.mxu0 0.0
  %37 = vmatpush1.msra.mxu0 0.0
  %38 = vmatprep.subr.mxu0 0.0
  %39 = vmatpush1.msra.mxu0 0.0
  %40 = vmatprep.subr.mxu0 0.0
  %41 = vmatpush1.msra.mxu0 0.0
  %42 = vmatprep.subr.mxu0 0.0
  %43 = vmatpush1.msra.mxu0 0.0
  %44 = vmatprep.subr.mxu0 0.0
  %45 = vmatpush1.msra.mxu0 0.0
  %46 = vmatprep.subr.mxu0 0.0
  %47 = vmatpush1.msra.mxu0 0.0
  %48 = vmatprep.subr.mxu0 0.0
  %49 = vmatpush1.msra.mxu0 0.0
  %50 = vmatprep.subr.mxu0 0.0
  %51 = vmatpush1.msra.mxu0 0.0
  %52 = vmatprep.subr.mxu0 0.0
  %53 = vmatpush1.msra.mxu0 0.0
  %54 = vmatprep.subr.mxu0 0.0
  %55 = vmatpush1.msra.mxu0 0.0
  %56 = vmatprep.subr.mxu0 0.0
  %57 = vmatpush1.msra.mxu0 0.0
  %58 = vmatprep.subr.mxu0 0.0
  %59 = vmatpush1.msra.mxu0 0.0
  %60 = vmatprep.subr.mxu0 0.0
  %61 = vmatpush1.msra.mxu0 0.0
  %62 = vmatprep.subr.mxu0 0.0
  %63 = vmatpush1.msra.mxu0 0.0
  %64 = vmatprep.subr.mxu0 0.0
  %65 = vmatpush1.msra.mxu0 0.0
  %66 = vmatprep.subr.mxu0 0.0
  %67 = vmatpush1.msra.mxu0 0.0
  %68 = vmatprep.subr.mxu0 0.0
  %69 = vmatpush1.msra.mxu0 0.0
  %70 = vmatprep.subr.mxu0 0.0
  %71 = vmatpush1.msra.mxu0 0.0
  %72 = vmatprep.subr.mxu0 0.0
  %73 = vmatpush1.msra.mxu0 0.0
  %74 = vmatprep.subr.mxu0 0.0
  %75 = vmatpush1.msra.mxu0 0.0
  %76 = vmatprep.subr.mxu0 0.0
  %77 = vmatpush1.msra.mxu0 0.0
  %78 = vmatprep.subr.mxu0 0.0
  %79 = vmatpush1.msra.mxu0 0.0
  %80 = vmatprep.subr.mxu0 0.0
  %81 = vmatpush1.msra.mxu0 0.0
  %82 = vmatprep.subr.mxu0 0.0
  %83 = vmatpush1.msra.mxu0 0.0
  %84 = vmatprep.subr.mxu0 0.0
  %85 = vmatpush1.msra.mxu0 0.0
  %86 = vmatprep.subr.mxu0 0.0
  %87 = vmatpush1.msra.mxu0 0.0
  %88 = vmatprep.subr.mxu0 0.0
  %89 = vmatpush1.msra.mxu0 0.0
  %90 = vmatprep.subr.mxu0 0.0
  %91 = vmatpush1.msra.mxu0 0.0
  %92 = vmatprep.mubr.f32.mxu0 0.0
  %93 = vmatmul.mubr.f32.gmra.mrb[0].mxu0 %v26
  %v94 = vpop.f32.mrb[0].mxu0
  %v95 = vadd.f32 %v22, %v94
  %v96 = vpop.f32.mrb[0].mxu0
  %97 = vdwg.mxu0
  %vm98 = vcmask 31744
  %99 = vst.msk [vmem:[%s3] sm:$0xff] %vm98, %v95
  // Predicated region
  $region14: #{tpu_custom_call.1} parent=0 // pred_check
    _
  $region15: #{tpu_custom_call.1} parent=0 // pred_check_branch
    %101 = sbr.rel (0) target = $region17
  $region16: #{tpu_custom_call.1} parent=0 // pred_region
    _
  $region17: #{tpu_custom_call.1} parent=0 // pred_fallthru
    _
  // Predicated region
  $region18: #{tpu_custom_call.1} parent=0 // pred_check
    _
  $region19: #{tpu_custom_call.1} parent=0 // pred_check_branch
    %103 = sbr.rel (0) target = $region21
  $region20: #{tpu_custom_call.1} parent=0 // pred_region
    _
  $region21: #{tpu_custom_call.1} parent=0 // pred_fallthru
    _

</llo_original>
